<compile_context>
chip_gen: v7x
topology: tpu7x:2x2x1
jax: 0.10.0
libtpu: 0.0.40
codegen_flags: <defaults>
</compile_context>

<pallas_src>
import numpy as np
import jax
import jax.numpy as jnp
from jax.experimental import pallas as pl
from jax.experimental.pallas import tpu as pltpu


def _round_up(x, m):
    return ((x + m - 1) // m) * m


# ----------------------------------------------------------------------------
# Single-buffering helper.  Batch-/grid-invariant blocks gain nothing from
# double buffering; a single buffer halves their VMEM footprint (matters most
# under v7x's 64 MiB VMEM).  Some Pallas builds do not honour pipeline_mode on
# pallas_call BlockSpecs, so the call sites retry without it on failure.
# ----------------------------------------------------------------------------
_SINGLE_BUFFER_OK = [True]


def _bspec(shape, index_map, *, single=False):
    if single and hasattr(pl, "Buffered"):
        try:
            return pl.BlockSpec(shape, index_map, pipeline_mode=pl.Buffered(1))
        except Exception:
            pass
    return pl.BlockSpec(shape, index_map)


def _call_single_buffer_safe(build):
    """build(single: bool) constructs and runs a pallas_call."""
    if _SINGLE_BUFFER_OK[0]:
        try:
            return build(True)
        except Exception:
            _SINGLE_BUFFER_OK[0] = False
    return build(False)


# ----------------------------------------------------------------------------
# Pallas kernel 1: row-tiled fused projector.  One pass over x computes
# y_j = x @ W_j + b_j for several (W_j, b_j), so every per-node quantity the
# attention kernel needs (projection / value / per-node score columns) is
# produced without re-reading the input or slicing slabs afterwards.
# ----------------------------------------------------------------------------
def _make_fused_linear_kernel(n_out):
    def kernel(*refs):
        x = refs[0][...]
        for j in range(n_out):
            w = refs[1 + 2 * j][...]
            b = refs[2 + 2 * j][...]
            refs[1 + 2 * n_out + j][...] = (
                jnp.dot(x, w, preferred_element_type=jnp.float32) + b
            )
    return kernel


def fused_linear_pallas(x, weights_and_biases, *, tm=512):
    """x: (M, F); weights_and_biases: [(W_j (F,P_j), b_j (P_j,)), ...]."""
    M, F = x.shape
    n_out = len(weights_and_biases)

    if M <= 8:
        tm_eff = M                                  # single full-row block
    else:
        # >= 2 grid steps (v7x: 2 TensorCores sharded over the parallel axis);
        # large tiles otherwise (per-grid-step overhead ~0.35us), up to `tm` rows.
        tm_eff = max(8, min(tm, _round_up(pl.cdiv(M, 2), 8)))
    grid = (pl.cdiv(M, tm_eff),)

    args = [x]
    for (w, b) in weights_and_biases:
        args.append(jnp.asarray(w, jnp.float32))
        args.append(jnp.asarray(b, jnp.float32).reshape(1, -1))

    out_shape = tuple(
        jax.ShapeDtypeStruct((M, w.shape[1]), jnp.float32)
        for (w, _) in weights_and_biases
    )

    def build(single):
        in_specs = [pl.BlockSpec((tm_eff, F), lambda i: (i, 0))]
        for (w, _) in weights_and_biases:
            P = w.shape[1]
            in_specs.append(_bspec((F, P), lambda i: (0, 0), single=single))
            in_specs.append(_bspec((1, P), lambda i: (0, 0), single=single))
        out_specs = tuple(
            pl.BlockSpec((tm_eff, w.shape[1]), lambda i: (i, 0))
            for (w, _) in weights_and_biases
        )
        return pl.pallas_call(
            _make_fused_linear_kernel(n_out),
            out_shape=out_shape,
            grid=grid,
            in_specs=in_specs,
            out_specs=out_specs,
            compiler_params=pltpu.CompilerParams(
                dimension_semantics=("parallel",)),
        )(*args)

    outs = _call_single_buffer_safe(build)
    return outs if isinstance(outs, (tuple, list)) else (outs,)


# ----------------------------------------------------------------------------
# Pallas kernel 2: lane-batched attention + aggregation + output construction.
#   - per-edge gathers from the small per-node tables via one-hot MXU matmuls
#   - LeakyReLU(0.2) + exp(clip(-2,2)) + neighbourhood softmax (MXU denominators)
#   - values[target_id_per_edge] indirection + contiguous-run segment sum folded
#     into ONE (Ns,Nt) comb matmul over the first Nt per-edge rows
#   - update_type='sum'; target rows overwritten by updated sources in-kernel
# ----------------------------------------------------------------------------
def _attention_kernel(srcp_ref, ssc_ref, val_ref, tsc_ref, tgtp_ref,
                      seg_ref, segt_ref, t1h_ref, comb_ref, scat_ref,
                      mask_ref, expand_ref, ba_ref, out_ref):
    Nt = val_ref.shape[0]

    seg = seg_ref[...].astype(jnp.float32)        # (E, Ns)  one-hot src_id_per_edge
    segt = segt_ref[...].astype(jnp.float32)      # (Ns, E)  its transpose (avoids in-kernel transpose)
    t1h = t1h_ref[...].astype(jnp.float32)        # (E, Nt)  one-hot tgt_id_per_edge
    comb = comb_ref[...].astype(jnp.float32)      # (Ns, Nt) fused indirection + segment-sum counts
    scat = scat_ref[...].astype(jnp.float32)      # (Nt, Ns) output scatter (uniq_src -> row)
    expand = expand_ref[...].astype(jnp.float32)  # (B, B*O) per-batch lane expansion

    # per-edge gathers for ALL batches at once (lane-batched one-hot matmuls)
    ve = jnp.dot(t1h, val_ref[...], preferred_element_type=jnp.float32)     # (E, B*O)
    tsc_e = jnp.dot(t1h, tsc_ref[...], preferred_element_type=jnp.float32)  # (E, B)
    ssc_e = jnp.dot(seg, ssc_ref[...], preferred_element_type=jnp.float32)  # (E, B)

    score = ssc_e + tsc_e + ba_ref[...]                        # (E, B)
    score = jnp.where(score >= 0.0, score, 0.2 * score)        # LeakyReLU(0.2)
    e_s = jnp.exp(jnp.clip(score, -2.0, 2.0))                  # exp(clip(., -2, 2))

    # neighbourhood softmax: per-source sums + gather-back, both on the MXU
    dps = jnp.dot(segt, e_s, preferred_element_type=jnp.float32)   # (Ns, B)
    den = jnp.dot(seg, dps, preferred_element_type=jnp.float32)    # (E, B)
    a_norm = e_s / den      # exact divide (not approx reciprocal) to preserve 1e-4 parity

    # broadcast each batch's attention weight across its O value lanes via a
    # tiny 0/1 expansion matmul (no in-kernel lane reshuffles)
    a_exp = jnp.dot(a_norm, expand, preferred_element_type=jnp.float32)  # (E, B*O)
    v3 = a_exp * ve                                                      # (E, B*O)

    # module quirk (per-edge values indexed by raw node id) + contiguous-run
    # segment sum, folded into one (Ns,Nt) matmul over the first Nt edge rows
    # (columns >= Nt of the old (Ns,E) comb were provably zero).
    agg = jnp.dot(comb, v3[:Nt, :], preferred_element_type=jnp.float32)  # (Ns, B*O)

    updated = srcp_ref[...] + agg                                        # update_type='sum'

    # fused output construction: projected target nodes with rows at raw source
    # node ids overwritten by the updated source nodes
    out_ref[...] = (1.0 - mask_ref[...]) * tgtp_ref[...] + jnp.dot(
        scat, updated, preferred_element_type=jnp.float32)


def attention_pallas(srcp, ssc_tab, val_tab, tsc_tab, tgtp,
                     seg, segt, t1h, comb, scat, mask, expand, ba2):
    Nt, BO = tgtp.shape
    E = seg.shape[0]

    # explicit scoped-VMEM budget: v5e default is 16 MiB (32 MiB on v6e/v7x);
    # capped at 56 MiB to stay inside v7x's 64 MiB physical VMEM.
    est = 4 * (srcp.size + ssc_tab.size + val_tab.size + tsc_tab.size
               + tgtp.size + mask.size + 1 + Nt * BO + 3 * E * BO) \
        + 2 * (seg.size + segt.size + t1h.size + comb.size + scat.size + expand.size)
    vmem_limit = int(min(max(2 * est + (8 << 20), 32 << 20), 56 << 20))

    def c2(i):
        return (0, 0)

    # TODO(synk): for graphs whose one-hots exceed the VMEM budget (esp. v7x's
    # 64 MiB), tile E as an inner 'arbitrary' axis with a two-pass softmax
    # (denominator accumulation, then normalize + aggregate) and add a second
    # parallel grid axis so both v7x TensorCores get work.
    def build(single):
        def bs(a, inv=False):
            return _bspec(a.shape, c2, single=(single and inv))
        in_specs = [
            bs(srcp), bs(ssc_tab), bs(val_tab), bs(tsc_tab), bs(tgtp),
            bs(seg, True), bs(segt, True), bs(t1h, True), bs(comb, True),
            bs(scat, True), bs(mask, True), bs(expand, True), bs(ba2),
        ]
        return pl.pallas_call(
            _attention_kernel,
            out_shape=jax.ShapeDtypeStruct((Nt, BO), jnp.float32),
            grid=(1,),
            in_specs=in_specs,
            out_specs=pl.BlockSpec((Nt, BO), c2),
            compiler_params=pltpu.CompilerParams(
                dimension_semantics=("arbitrary",),
                vmem_limit_bytes=vmem_limit),
        )(srcp, ssc_tab, val_tab, tsc_tab, tgtp,
          seg, segt, t1h, comb, scat, mask, expand, ba2)

    return _call_single_buffer_safe(build)


# ----------------------------------------------------------------------------
# Forward wrapper.  Static edge-index bookkeeping is host-side numpy; all the
# matmul / softmax / aggregation hot path runs in the Pallas kernels above.
# Only the module's default configuration is implemented.
# TODO(synk): non-default branches (values_type 'cat'/'gru', aggregation
# 'mean'/'max', update 'cat'/'gru'/'mul'/..., use_same_projector, batch_first)
# are not implemented.
# ----------------------------------------------------------------------------
def concat_paired_node_attention(nodes, edges, params):
    Ws, bs, Wt, bt, Wv, bv, Wa, ba = params
    edges = np.asarray(edges, dtype=np.int64)

    uniq_src, src_inv = np.unique(edges[:, 0], return_inverse=True)
    uniq_tgt, tgt_inv = np.unique(edges[:, 1], return_inverse=True)
    Ns, Nt, E = len(uniq_src), len(uniq_tgt), int(edges.shape[0])
    _, B, F = nodes.shape
    O = Ws.shape[0]

    # the module's `out[uniq_src] = source_nodes` indexes an (Nt, ...) tensor with
    # raw node ids; it only runs without error if max(uniq_src) < Nt.
    assert int(uniq_src.max()) < Nt, \
        "faithful output construction requires source ids < #unique targets"
    # the fused comb segment-sum matches the module's contiguous-run walk only
    # when each source's edges are grouped (e.g. edge list sorted by source).
    assert 1 + int(np.count_nonzero(np.diff(src_inv))) == Ns, \
        "edges must be grouped (contiguous) by source node"

    wa_s = Wa[:, :O].T                    # (O, 1)
    wa_t = Wa[:, O:].T                    # (O, 1)

    # Fused projector weights (host-side, tiny).  Each node group is projected in
    # ONE pallas_call that emits every per-node column the attention kernel uses.
    src_wb = [
        (Ws.T, bs),                                            # (F,O) source projection
        (Ws.T @ wa_s, jnp.dot(bs, wa_s[:, 0]).reshape(1)),     # (F,1) per-source score column
    ]
    tgt_wb = [
        (Wv.T, bv),                                            # (F,O) value projection
        (Wt.T @ wa_t, jnp.dot(bt, wa_t[:, 0]).reshape(1)),     # (F,1) per-target score column
        (Wt.T, bt),                                            # (F,O) target projection (output rows)
    ]

    nodes = jnp.asarray(nodes, jnp.float32)
    # node-major rows -> every lane-batched reshape below is a free (no-copy) reshape
    src_in = nodes[uniq_src].reshape(Ns * B, F)
    tgt_in = nodes[uniq_tgt].reshape(Nt * B, F)

    sp, ss = fused_linear_pallas(src_in, src_wb)
    vv, ts, tp = fused_linear_pallas(tgt_in, tgt_wb)

    srcp = sp.reshape(Ns, B * O)      # projected source nodes, lane-batched
    ssc_tab = ss.reshape(Ns, B)       # per-source attention-score contribution
    val_tab = vv.reshape(Nt, B * O)   # projected values
    tsc_tab = ts.reshape(Nt, B)       # per-target attention-score contribution
    tgtp = tp.reshape(Nt, B * O)      # projected target nodes (output rows)

    # batch-invariant structure matrices, bf16 (0/1 and small integer counts exact)
    seg_np = np.zeros((E, Ns), np.float32)
    seg_np[np.arange(E), src_inv] = 1.0
    t1h_np = np.zeros((E, Nt), np.float32)
    t1h_np[np.arange(E), tgt_inv] = 1.0
    comb_np = np.zeros((Ns, Nt), np.float32)        # shrunk (Ns,E) -> (Ns,Nt)
    np.add.at(comb_np, (src_inv, tgt_inv), 1.0)
    assert comb_np.max() <= 256.0, "bf16 comb counts exact only up to 256 per (src,tgt) pair"
    scat_np = np.zeros((Nt, Ns), np.float32)        # output scatter: row uniq_src[s] <- source s
    scat_np[uniq_src, np.arange(Ns)] = 1.0
    mask_np = scat_np.sum(axis=1, keepdims=True)    # (Nt,1), 1 where a source row overwrites
    expand_np = np.zeros((B, B * O), np.float32)    # broadcast attn weight over its O lanes
    for b in range(B):
        expand_np[b, b * O:(b + 1) * O] = 1.0

    seg = jnp.asarray(seg_np, jnp.bfloat16)
    segt = jnp.asarray(seg_np.T, jnp.bfloat16)      # keeps both softmax reductions on the MXU
    t1h = jnp.asarray(t1h_np, jnp.bfloat16)
    comb = jnp.asarray(comb_np, jnp.bfloat16)
    scat = jnp.asarray(scat_np, jnp.bfloat16)
    mask = jnp.asarray(mask_np, jnp.float32)
    expand = jnp.asarray(expand_np, jnp.bfloat16)
    ba2 = jnp.asarray(ba, jnp.float32).reshape(1, 1)

    out_flat = attention_pallas(srcp, ssc_tab, val_tab, tsc_tab, tgtp,
                                seg, segt, t1h, comb, scat, mask, expand, ba2)
    return out_flat.reshape(Nt, B, O)


# ----------------------------------------------------------------------------
# Pure-JAX reference (mirrors the PyTorch forward line-by-line) for validation.
# ----------------------------------------------------------------------------
def reference_forward(nodes, edges, params):
    Ws, bs, Wt, bt, Wv, bv, Wa, ba = params
    edges = np.asarray(edges, dtype=np.int64)
    uniq_src, src_inv = np.unique(edges[:, 0], return_inverse=True)
    uniq_tgt, tgt_inv = np.unique(edges[:, 1], return_inverse=True)
    Ns, Nt = len(uniq_src), len(uniq_tgt)
    _, B, _ = nodes.shape
    O = Ws.shape[0]

    source_nodes = nodes[uniq_src] @ Ws.T + bs                 # (Ns, B, O)
    target_nodes = nodes[uniq_tgt] @ Wt.T + bt                 # (Nt, B, O)
    paired = jnp.concatenate([source_nodes[src_inv], target_nodes[tgt_inv]], -1)
    paired = jnp.transpose(paired, (1, 0, 2))                  # (B, E, 2O)
    s = paired @ Wa.T + ba                                     # (B, E, 1)
    s = jnp.where(s >= 0, s, 0.2 * s)
    es = jnp.exp(jnp.clip(s, -2.0, 2.0))
    sums = jnp.zeros((B, Ns, 1)).at[:, src_inv, :].add(es)
    a_norm = es / sums[:, src_inv, :]
    values = nodes[uniq_tgt] @ Wv.T + bv                       # (Nt, B, O)
    values_3 = a_norm * jnp.transpose(values[tgt_inv], (1, 0, 2))   # (B, E, O)
    V = jnp.transpose(values_3, (1, 0, 2))                     # (E, B, O)
    contrib = V[tgt_inv]                                       # (E, B, O)
    agg = jnp.zeros((Ns, B, O)).at[src_inv].add(contrib)
    updated = source_nodes + agg
    return target_nodes.at[jnp.asarray(uniq_src)].set(updated)


if __name__ == "__main__":
    in_features, out_features = 16, 32
    num_nodes, batch = 6, 4
    # edges grouped (sorted) by source node, matching the module's contiguous-
    # segment aggregation loop
    edges = np.array([[0, 1], [0, 2], [1, 0], [1, 3],
                      [2, 1], [2, 4], [3, 2], [3, 5]], dtype=np.int64)

    key = jax.random.PRNGKey(0)
    keys = jax.random.split(key, 9)

    def linear_init(kw, kb, fan_in, fan_out):
        lim = 1.0 / np.sqrt(fan_in)
        W = jax.random.uniform(kw, (fan_out, fan_in), jnp.float32, -lim, lim)
        b = jax.random.uniform(kb, (fan_out,), jnp.float32, -lim, lim)
        return W, b

    Ws, bs = linear_init(keys[0], keys[1], in_features, out_features)   # source_projector
    Wt, bt = linear_init(keys[2], keys[3], in_features, out_features)   # target_projector
    Wv, bv = linear_init(keys[4], keys[5], in_features, out_features)   # value_projector
    Wa, ba = linear_init(keys[6], keys[7], 2 * out_features, 1)         # attention
    params = (Ws, bs, Wt, bt, Wv, bv, Wa, ba)

    nodes = jax.random.normal(keys[8], (num_nodes, batch, in_features), jnp.float32)

    out = concat_paired_node_attention(nodes, edges, params)
    out = jax.block_until_ready(out)

    ref = reference_forward(nodes, edges, params)
    np.testing.assert_allclose(np.asarray(out), np.asarray(ref), rtol=1e-4, atol=1e-4)
    print("KERNEL_OK")
</pallas_src>

<mosaic_0001>
module attributes {stable_mosaic.version = 11 : i64} {
  func.func @kernel(%arg0: i32, %arg1: memref<8x16xf32, #tpu.memory_space<vmem>>, %arg2: memref<16x32xf32, #tpu.memory_space<vmem>>, %arg3: memref<1x32xf32, #tpu.memory_space<vmem>>, %arg4: memref<16x1xf32, #tpu.memory_space<vmem>>, %arg5: memref<1x1xf32, #tpu.memory_space<vmem>>, %arg6: memref<8x32xf32, #tpu.memory_space<vmem>>, %arg7: memref<8x1xf32, #tpu.memory_space<vmem>>) attributes {dimension_semantics = [#tpu.dimension_semantics<parallel>], iteration_bounds = array<i64: 2>, scalar_prefetch = 0 : i64, scratch_operands = 0 : i64, tpu.core_type = #tpu.core_type<tc>, window_params = [{transform_indices = @transform_0, window_bounds = array<i64: 8, 16>}, {pipeline_mode = #tpu.pipeline_mode<synchronous>, transform_indices = @transform_1, window_bounds = array<i64: 16, 32>}, {pipeline_mode = #tpu.pipeline_mode<synchronous>, transform_indices = @transform_2, window_bounds = array<i64: 1, 32>}, {pipeline_mode = #tpu.pipeline_mode<synchronous>, transform_indices = @transform_3, window_bounds = array<i64: 16, 1>}, {pipeline_mode = #tpu.pipeline_mode<synchronous>, transform_indices = @transform_4, window_bounds = array<i64: 1, 1>}, {transform_indices = @transform_5, window_bounds = array<i64: 8, 32>}, {transform_indices = @transform_6, window_bounds = array<i64: 8, 1>}]} {
    %c0 = arith.constant 0 : index
    %c0_0 = arith.constant 0 : index
    %0 = vector.load %arg1[%c0, %c0_0] : memref<8x16xf32, #tpu.memory_space<vmem>>, vector<8x16xf32>
    %c0_1 = arith.constant 0 : index
    %c0_2 = arith.constant 0 : index
    %1 = vector.load %arg2[%c0_1, %c0_2] : memref<16x32xf32, #tpu.memory_space<vmem>>, vector<16x32xf32>
    %c0_3 = arith.constant 0 : index
    %c0_4 = arith.constant 0 : index
    %2 = vector.load %arg3[%c0_3, %c0_4] : memref<1x32xf32, #tpu.memory_space<vmem>>, vector<1x32xf32>
    %cst = arith.constant dense<0.000000e+00> : vector<8x32xf32>
    %3 = tpu.matmul %0, %1, %cst {dimension_numbers = #tpu.dot_dimension_numbers<[1], [0], [0], [1], [0, 0, 1, 1], [], []>} : vector<8x16xf32>, vector<16x32xf32>, vector<8x32xf32> -> vector<8x32xf32>
    %4 = vector.broadcast %2 : vector<1x32xf32> to vector<8x32xf32>
    %5 = arith.addf %3, %4 : vector<8x32xf32>
    %c0_5 = arith.constant 0 : index
    %c0_6 = arith.constant 0 : index
    %6 = vector.load %arg6[%c0_5, %c0_6] : memref<8x32xf32, #tpu.memory_space<vmem>>, vector<8x32xf32>
    tpu.vector_store %arg6[%c0_5, %c0_6], %5 {strides = array<i32>} : memref<8x32xf32, #tpu.memory_space<vmem>>, vector<8x32xf32>,
    %c0_7 = arith.constant 0 : index
    %c0_8 = arith.constant 0 : index
    %7 = vector.load %arg4[%c0_7, %c0_8] : memref<16x1xf32, #tpu.memory_space<vmem>>, vector<16x1xf32>
    %c0_9 = arith.constant 0 : index
    %c0_10 = arith.constant 0 : index
    %8 = vector.load %arg5[%c0_9, %c0_10] : memref<1x1xf32, #tpu.memory_space<vmem>>, vector<1x1xf32>
    %cst_11 = arith.constant dense<0.000000e+00> : vector<8x1xf32>
    %9 = tpu.matmul %0, %7, %cst_11 {dimension_numbers = #tpu.dot_dimension_numbers<[1], [0], [0], [1], [0, 0, 1, 1], [], []>} : vector<8x16xf32>, vector<16x1xf32>, vector<8x1xf32> -> vector<8x1xf32>
    %10 = vector.broadcast %8 : vector<1x1xf32> to vector<8x1xf32>
    %11 = arith.addf %9, %10 : vector<8x1xf32>
    %c0_12 = arith.constant 0 : index
    %c0_13 = arith.constant 0 : index
    %12 = vector.load %arg7[%c0_12, %c0_13] : memref<8x1xf32, #tpu.memory_space<vmem>>, vector<8x1xf32>
    tpu.vector_store %arg7[%c0_12, %c0_13], %11 {strides = array<i32>} : memref<8x1xf32, #tpu.memory_space<vmem>>, vector<8x1xf32>,
    return
  }
  func.func @transform_0(%arg0: i32) -> (i32, i32) {
    %c0_i32 = arith.constant 0 : i32
    %c0_i32_0 = arith.constant 0 : i32
    return %arg0, %c0_i32 : i32, i32
  }
  func.func @transform_1(%arg0: i32) -> (i32, i32) {
    %c0_i32 = arith.constant 0 : i32
    %c0_i32_0 = arith.constant 0 : i32
    %c0_i32_1 = arith.constant 0 : i32
    return %c0_i32, %c0_i32_0 : i32, i32
  }
  func.func @transform_2(%arg0: i32) -> (i32, i32) {
    %c0_i32 = arith.constant 0 : i32
    %c0_i32_0 = arith.constant 0 : i32
    %c0_i32_1 = arith.constant 0 : i32
    return %c0_i32, %c0_i32_0 : i32, i32
  }
  func.func @transform_3(%arg0: i32) -> (i32, i32) {
    %c0_i32 = arith.constant 0 : i32
    %c0_i32_0 = arith.constant 0 : i32
    %c0_i32_1 = arith.constant 0 : i32
    return %c0_i32, %c0_i32_0 : i32, i32
  }
  func.func @transform_4(%arg0: i32) -> (i32, i32) {
    %c0_i32 = arith.constant 0 : i32
    %c0_i32_0 = arith.constant 0 : i32
    %c0_i32_1 = arith.constant 0 : i32
    return %c0_i32, %c0_i32_0 : i32, i32
  }
  func.func @transform_5(%arg0: i32) -> (i32, i32) {
    %c0_i32 = arith.constant 0 : i32
    %c0_i32_0 = arith.constant 0 : i32
    return %arg0, %c0_i32 : i32, i32
  }
  func.func @transform_6(%arg0: i32) -> (i32, i32) {
    %c0_i32 = arith.constant 0 : i32
    %c0_i32_0 = arith.constant 0 : i32
    return %arg0, %c0_i32 : i32, i32
  }
}

module attributes {stable_mosaic.version = 11 : i64} {
  func.func @kernel(%arg0: i32, %arg1: memref<8x16xf32, #tpu.memory_space<vmem>>, %arg2: memref<16x32xf32, #tpu.memory_space<vmem>>, %arg3: memref<1x32xf32, #tpu.memory_space<vmem>>, %arg4: memref<16x1xf32, #tpu.memory_space<vmem>>, %arg5: memref<1x1xf32, #tpu.memory_space<vmem>>, %arg6: memref<8x32xf32, #tpu.memory_space<vmem>>, %arg7: memref<8x1xf32, #tpu.memory_space<vmem>>) attributes {dimension_semantics = [#tpu.dimension_semantics<parallel>], iteration_bounds = array<i64: 2>, scalar_prefetch = 0 : i64, scratch_operands = 0 : i64, tpu.core_type = #tpu.core_type<tc>, window_params = [{transform_indices = @transform_0, window_bounds = array<i64: 8, 16>}, {pipeline_mode = #tpu.pipeline_mode<synchronous>, transform_indices = @transform_1, window_bounds = array<i64: 16, 32>}, {pipeline_mode = #tpu.pipeline_mode<synchronous>, transform_indices = @transform_2, window_bounds = array<i64: 1, 32>}, {pipeline_mode = #tpu.pipeline_mode<synchronous>, transform_indices = @transform_3, window_bounds = array<i64: 16, 1>}, {pipeline_mode = #tpu.pipeline_mode<synchronous>, transform_indices = @transform_4, window_bounds = array<i64: 1, 1>}, {transform_indices = @transform_5, window_bounds = array<i64: 8, 32>}, {transform_indices = @transform_6, window_bounds = array<i64: 8, 1>}]} {
    %c0 = arith.constant 0 : index
    %c0_0 = arith.constant 0 : index
    %0 = vector.load %arg1[%c0, %c0_0] : memref<8x16xf32, #tpu.memory_space<vmem>>, vector<8x16xf32>
    %c0_1 = arith.constant 0 : index
    %c0_2 = arith.constant 0 : index
    %1 = vector.load %arg2[%c0_1, %c0_2] : memref<16x32xf32, #tpu.memory_space<vmem>>, vector<16x32xf32>
    %c0_3 = arith.constant 0 : index
    %c0_4 = arith.constant 0 : index
    %2 = vector.load %arg3[%c0_3, %c0_4] : memref<1x32xf32, #tpu.memory_space<vmem>>, vector<1x32xf32>
    %cst = arith.constant dense<0.000000e+00> : vector<8x32xf32>
    %3 = tpu.matmul %0, %1, %cst {dimension_numbers = #tpu.dot_dimension_numbers<[1], [0], [0], [1], [0, 0, 1, 1], [], []>} : vector<8x16xf32>, vector<16x32xf32>, vector<8x32xf32> -> vector<8x32xf32>
    %4 = vector.broadcast %2 : vector<1x32xf32> to vector<8x32xf32>
    %5 = arith.addf %3, %4 : vector<8x32xf32>
    %c0_5 = arith.constant 0 : index
    %c0_6 = arith.constant 0 : index
    %6 = vector.load %arg6[%c0_5, %c0_6] : memref<8x32xf32, #tpu.memory_space<vmem>>, vector<8x32xf32>
    tpu.vector_store %arg6[%c0_5, %c0_6], %5 {strides = array<i32>} : memref<8x32xf32, #tpu.memory_space<vmem>>, vector<8x32xf32>,
    %c0_7 = arith.constant 0 : index
    %c0_8 = arith.constant 0 : index
    %7 = vector.load %arg4[%c0_7, %c0_8] : memref<16x1xf32, #tpu.memory_space<vmem>>, vector<16x1xf32>
    %c0_9 = arith.constant 0 : index
    %c0_10 = arith.constant 0 : index
    %8 = vector.load %arg5[%c0_9, %c0_10] : memref<1x1xf32, #tpu.memory_space<vmem>>, vector<1x1xf32>
    %cst_11 = arith.constant dense<0.000000e+00> : vector<8x1xf32>
    %9 = tpu.matmul %0, %7, %cst_11 {dimension_numbers = #tpu.dot_dimension_numbers<[1], [0], [0], [1], [0, 0, 1, 1], [], []>} : vector<8x16xf32>, vector<16x1xf32>, vector<8x1xf32> -> vector<8x1xf32>
    %10 = vector.broadcast %8 : vector<1x1xf32> to vector<8x1xf32>
    %11 = arith.addf %9, %10 : vector<8x1xf32>
    %c0_12 = arith.constant 0 : index
    %c0_13 = arith.constant 0 : index
    %12 = vector.load %arg7[%c0_12, %c0_13] : memref<8x1xf32, #tpu.memory_space<vmem>>, vector<8x1xf32>
    tpu.vector_store %arg7[%c0_12, %c0_13], %11 {strides = array<i32>} : memref<8x1xf32, #tpu.memory_space<vmem>>, vector<8x1xf32>,
    return
  }
  func.func @transform_0(%arg0: i32) -> (i32, i32) {
    %c0_i32 = arith.constant 0 : i32
    %c0_i32_0 = arith.constant 0 : i32
    return %arg0, %c0_i32 : i32, i32
  }
  func.func @transform_1(%arg0: i32) -> (i32, i32) {
    %c0_i32 = arith.constant 0 : i32
    %c0_i32_0 = arith.constant 0 : i32
    %c0_i32_1 = arith.constant 0 : i32
    return %c0_i32, %c0_i32_0 : i32, i32
  }
  func.func @transform_2(%arg0: i32) -> (i32, i32) {
    %c0_i32 = arith.constant 0 : i32
    %c0_i32_0 = arith.constant 0 : i32
    %c0_i32_1 = arith.constant 0 : i32
    return %c0_i32, %c0_i32_0 : i32, i32
  }
  func.func @transform_3(%arg0: i32) -> (i32, i32) {
    %c0_i32 = arith.constant 0 : i32
    %c0_i32_0 = arith.constant 0 : i32
    %c0_i32_1 = arith.constant 0 : i32
    return %c0_i32, %c0_i32_0 : i32, i32
  }
  func.func @transform_4(%arg0: i32) -> (i32, i32) {
    %c0_i32 = arith.constant 0 : i32
    %c0_i32_0 = arith.constant 0 : i32
    %c0_i32_1 = arith.constant 0 : i32
    return %c0_i32, %c0_i32_0 : i32, i32
  }
  func.func @transform_5(%arg0: i32) -> (i32, i32) {
    %c0_i32 = arith.constant 0 : i32
    %c0_i32_0 = arith.constant 0 : i32
    return %arg0, %c0_i32 : i32, i32
  }
  func.func @transform_6(%arg0: i32) -> (i32, i32) {
    %c0_i32 = arith.constant 0 : i32
    %c0_i32_0 = arith.constant 0 : i32
    return %arg0, %c0_i32 : i32, i32
  }
}

</mosaic_0001>

<llo_original>
// kernel: tpu_custom_call.1
$region0: #{tpu_custom_call.1}
  #allocation0 [shape = 'u32[]', space=smem, size = 0x4, offset = 0x4, fixed_abs, tag = 'smem constant byte address 0x4 - core index']
  #allocation1 [shape = 'u32[144,128]{1,0:T(1,128)}', space=vmem, size = 0x12000, scoped, tag = 'internal scratch']
  #allocation2 [shape = 'f32[1,1]{1,0:T(1,128)S(1)}', space=vmem, size = 0x200, scoped, tag = 'scoped memory for tpu_custom_call.1']
  %s0 = inlined_call_operand.vmem [shape: f32[16,16], index: 0, kind: input, shape index: {}]
  %s1 = inlined_call_operand.hbm [shape: f32[16,32], index: 1, kind: input, shape index: {}]
  %s2 = inlined_call_operand.vmem [shape: f32[1,32], index: 2, kind: input, shape index: {}]
  %s3 = inlined_call_operand.vmem [shape: f32[16,1], index: 3, kind: input, shape index: {}]
  %s4 = inlined_call_operand.<no memory space> [shape: f32[1,1], index: 4, kind: input, shape index: {}]
  %s5 = inlined_call_operand.hbm [shape: f32[16,32], index: 5, kind: output, shape index: {0}]
  %s6 = inlined_call_operand.vmem [shape: f32[16,1], index: 6, kind: output, shape index: {1}]
  %7 = xla_tuple %s5, %s6
  %s8 = sld [smem:[#allocation0]]
  $region65: #{tpu_custom_call.1} parent=0
    _
  %s10 = ssub.s32 1, %s8
  %s11 = scalar_select 0, %s10, %s8
  %v12 = vstv %s4
  %13 = vst [vmem:[#allocation2] sm:$0x1] %v12
  $region1: #{tpu_custom_call.1} parent=0
    #allocation3 [shape = 'u8[8192]{0}', space=vmem, size = 0x2000, scoped, tag = 'input window, operand 1, single buffered']
    #allocation4 [shape = 's32[2]{0}', space=sflag, size = 0x8, scoped, tag = 'scoped memory for tpu_custom_call.1']
    #allocation5 [shape = 's32[2]{0}', space=sflag, size = 0x8, scoped, tag = 'scoped memory for tpu_custom_call.1']
    #allocation6 [shape = 'u8[8192]{0}', space=vmem, size = 0x2000, scoped, tag = 'output window, operand 0']
    %14 = vsyncpa [#allocation4], 0
    %15 = vsyncpa [#allocation5], 0
    %s16 = scalar_lea.sflag [#allocation5], 1
    %17 = vsyncpa %s16, 0
    loop: start=0, step=1, limit=4
    $region2: #{tpu_custom_call.1} parent=1 // loop_pre_header
      _
    $region3: #{tpu_custom_call.1} parent=1 // loop_header
      %s19 = sphi 0, %s23
      %p20 = scmp.ge.s32.totalorder %s19, 4
      %s29 = sphi 0, %s31
      %s32 = sphi 0, %s29
      %s33 = sphi 0, %s32
      %s49 = sphi 0, %s33
      %s53 = sphi 0, %s53
      %s55 = sphi 0, %s53
      %s56 = sphi 0, %s55
      %s70 = sphi 0, %s56
      %s74 = sphi 0, %s74
      %s76 = sphi 0, %s74
      %s77 = sphi 0, %s76
      %s91 = sphi 0, %s77
      %s95 = sphi 0, %s95
      %s97 = sphi 0, %s95
      %s98 = sphi 0, %s97
      %s112 = sphi 0, %s98
      %s116 = sphi 0, %s116
      %s118 = sphi 0, %s116
      %s119 = sphi 0, %s118
      %s133 = sphi 0, %s119
      %s139 = sphi 0, %s141
      %s142 = sphi 0, %s139
      %s143 = sphi 0, %s142
      %s159 = sphi 0, %s143
      %s165 = sphi 0, %s167
      %s168 = sphi 0, %s165
      %s169 = sphi 0, %s168
      %s185 = sphi 0, %s169
    $region4: #{tpu_custom_call.1} parent=1 // loop_header_branch
      %22 = sbr.rel (%p20) target = $region8
    $region5: #{tpu_custom_call.1} parent=1 // loop_body
      %s24 = ssub.s32 %s19, 1
      %s25 = ssub.s32 %s19, 2
      %s26 = sadd.s32 %s19, 1
      %s27 = ssub.s32 %s19, %s26
      %p28 = scmp.eq.s32.totalorder %s27, 0
      %s30 = sadd.s32 %s29, 1
      %s31 = scalar_select %p28, %s29, %s30
      %p34 = pneg %p28
      %p35 = scmp.eq.s32.totalorder %s19, 1
      %p36 = por %p34, %p35
      %p37 = scmp.ne.s32.totalorder %s29, %s32
      %p38 = scmp.eq.s32.totalorder %s19, 0
      %p39 = por %p37, %p38
      %p40 = scmp.ne.s32.totalorder %s29, %s32
      %p41 = scmp.eq.s32.totalorder %s24, 1
      %p42 = por %p40, %p41
      %p43 = scmp.ne.s32.totalorder %s32, %s33
      %p44 = scmp.eq.s32.totalorder %s24, 0
      %p45 = por %p43, %p44
      %p46 = scmp.ne.s32.totalorder %s32, %s33
      %p47 = scmp.eq.s32.totalorder %s25, 1
      %p48 = por %p46, %p47
      %p50 = scmp.ne.s32.totalorder %s33, %s49
      %p51 = scmp.eq.s32.totalorder %s25, 0
      %p52 = por %p50, %p51
      %s54 = sadd.s32 %s53, 1
      %p57 = scmp.eq.s32.totalorder %s19, 1
      %p58 = scmp.ne.s32.totalorder %s53, %s55
      %p59 = scmp.eq.s32.totalorder %s19, 0
      %p60 = por %p58, %p59
      %p61 = scmp.ne.s32.totalorder %s53, %s55
      %p62 = scmp.eq.s32.totalorder %s24, 1
      %p63 = por %p61, %p62
      %p64 = scmp.ne.s32.totalorder %s55, %s56
      %p65 = scmp.eq.s32.totalorder %s24, 0
      %p66 = por %p64, %p65
      %p67 = scmp.ne.s32.totalorder %s55, %s56
      %p68 = scmp.eq.s32.totalorder %s25, 1
      %p69 = por %p67, %p68
      %p71 = scmp.ne.s32.totalorder %s56, %s70
      %p72 = scmp.eq.s32.totalorder %s25, 0
      %p73 = por %p71, %p72
      %s75 = sadd.s32 %s74, 1
      %p78 = scmp.eq.s32.totalorder %s19, 1
      %p79 = scmp.ne.s32.totalorder %s74, %s76
      %p80 = scmp.eq.s32.totalorder %s19, 0
      %p81 = por %p79, %p80
      %p82 = scmp.ne.s32.totalorder %s74, %s76
      %p83 = scmp.eq.s32.totalorder %s24, 1
      %p84 = por %p82, %p83
      %p85 = scmp.ne.s32.totalorder %s76, %s77
      %p86 = scmp.eq.s32.totalorder %s24, 0
      %p87 = por %p85, %p86
      %p88 = scmp.ne.s32.totalorder %s76, %s77
      %p89 = scmp.eq.s32.totalorder %s25, 1
      %p90 = por %p88, %p89
      %p92 = scmp.ne.s32.totalorder %s77, %s91
      %p93 = scmp.eq.s32.totalorder %s25, 0
      %p94 = por %p92, %p93
      %s96 = sadd.s32 %s95, 1
      %p99 = scmp.eq.s32.totalorder %s19, 1
      %p100 = scmp.ne.s32.totalorder %s95, %s97
      %p101 = scmp.eq.s32.totalorder %s19, 0
      %p102 = por %p100, %p101
      %p103 = scmp.ne.s32.totalorder %s95, %s97
      %p104 = scmp.eq.s32.totalorder %s24, 1
      %p105 = por %p103, %p104
      %p106 = scmp.ne.s32.totalorder %s97, %s98
      %p107 = scmp.eq.s32.totalorder %s24, 0
      %p108 = por %p106, %p107
      %p109 = scmp.ne.s32.totalorder %s97, %s98
      %p110 = scmp.eq.s32.totalorder %s25, 1
      %p111 = por %p109, %p110
      %p113 = scmp.ne.s32.totalorder %s98, %s112
      %p114 = scmp.eq.s32.totalorder %s25, 0
      %p115 = por %p113, %p114
      %s117 = sadd.s32 %s116, 1
      %p120 = scmp.eq.s32.totalorder %s19, 1
      %p121 = scmp.ne.s32.totalorder %s116, %s118
      %p122 = scmp.eq.s32.totalorder %s19, 0
      %p123 = por %p121, %p122
      %p124 = scmp.ne.s32.totalorder %s116, %s118
      %p125 = scmp.eq.s32.totalorder %s24, 1
      %p126 = por %p124, %p125
      %p127 = scmp.ne.s32.totalorder %s118, %s119
      %p128 = scmp.eq.s32.totalorder %s24, 0
      %p129 = por %p127, %p128
      %p130 = scmp.ne.s32.totalorder %s118, %s119
      %p131 = scmp.eq.s32.totalorder %s25, 1
      %p132 = por %p130, %p131
      %p134 = scmp.ne.s32.totalorder %s119, %s133
      %p135 = scmp.eq.s32.totalorder %s25, 0
      %p136 = por %p134, %p135
      %s137 = ssub.s32 %s19, %s26
      %p138 = scmp.eq.s32.totalorder %s137, 0
      %s140 = sadd.s32 %s139, 1
      %s141 = scalar_select %p138, %s139, %s140
      %p144 = pneg %p138
      %p145 = scmp.eq.s32.totalorder %s19, 1
      %p146 = por %p144, %p145
      %p147 = scmp.ne.s32.totalorder %s139, %s142
      %p148 = scmp.eq.s32.totalorder %s19, 0
      %p149 = por %p147, %p148
      %p150 = scmp.ne.s32.totalorder %s139, %s142
      %p151 = scmp.eq.s32.totalorder %s24, 1
      %p152 = por %p150, %p151
      %p153 = scmp.ne.s32.totalorder %s142, %s143
      %p154 = scmp.eq.s32.totalorder %s24, 0
      %p155 = por %p153, %p154
      %p156 = scmp.ne.s32.totalorder %s142, %s143
      %p157 = scmp.eq.s32.totalorder %s25, 1
      %p158 = por %p156, %p157
      %p160 = scmp.ne.s32.totalorder %s143, %s159
      %p161 = scmp.eq.s32.totalorder %s25, 0
      %p162 = por %p160, %p161
      %s163 = ssub.s32 %s19, %s26
      %p164 = scmp.eq.s32.totalorder %s163, 0
      %s166 = sadd.s32 %s165, 1
      %s167 = scalar_select %p164, %s165, %s166
      %p170 = pneg %p164
      %p171 = scmp.eq.s32.totalorder %s19, 1
      %p172 = por %p170, %p171
      %p173 = scmp.ne.s32.totalorder %s165, %s168
      %p174 = scmp.eq.s32.totalorder %s19, 0
      %p175 = por %p173, %p174
      %p176 = scmp.ne.s32.totalorder %s165, %s168
      %p177 = scmp.eq.s32.totalorder %s24, 1
      %p178 = por %p176, %p177
      %p179 = scmp.ne.s32.totalorder %s168, %s169
      %p180 = scmp.eq.s32.totalorder %s24, 0
      %p181 = por %p179, %p180
      %p182 = scmp.ne.s32.totalorder %s168, %s169
      %p183 = scmp.eq.s32.totalorder %s25, 1
      %p184 = por %p182, %p183
      %p186 = scmp.ne.s32.totalorder %s169, %s185
      %p187 = scmp.eq.s32.totalorder %s25, 0
      %p188 = por %p186, %p187
      %p189 = scmp.le.s32.totalorder 1, %s19
      %p190 = scmp.lt.s32.totalorder %s19, 3
      %p191 = pnand %p189, %p190
      %p192 = pneg %p191
      // Predicated region
      $region9: #{tpu_custom_call.1} parent=5 // pred_check
        _
      $region10: #{tpu_custom_call.1} parent=5 // pred_check_branch
        %194 = sbr.rel (%p191) target = $region12
      $region11: #{tpu_custom_call.1} parent=5 // pred_region
        %s195 = ssub.s32 %s19, 1
        // Predicated region
        $region13: #{tpu_custom_call.1} parent=11 // pred_check
          %p196 = pneg %p66
        $region14: #{tpu_custom_call.1} parent=11 // pred_check_branch
          %198 = sbr.rel (%p196) target = $region16
        $region15: #{tpu_custom_call.1} parent=11 // pred_region
          %s200 = ssub.s32 256, 256
          %201 = vsyncadd [#allocation4], %s200
          %s202 = sshll.u32 [#allocation3], 4
          %s203 = int_to_ptr.vmem [resolvable:$true] %s202
          %208 = dma.hbm_to_vmem [thread:$0]  %s1, 256, %s203, [#allocation4], 128, 128, 8
        $region16: #{tpu_custom_call.1} parent=11 // pred_fallthru
          _
        // Predicated region
        $region17: #{tpu_custom_call.1} parent=11 // pred_check
          %p209 = pneg %p87
        $region18: #{tpu_custom_call.1} parent=11 // pred_check_branch
          %211 = sbr.rel (%p209) target = $region20
        $region19: #{tpu_custom_call.1} parent=11 // pred_region
          _
        $region20: #{tpu_custom_call.1} parent=11 // pred_fallthru
          _
        // Predicated region
        $region21: #{tpu_custom_call.1} parent=11 // pred_check
          %p212 = pneg %p108
        $region22: #{tpu_custom_call.1} parent=11 // pred_check_branch
          %214 = sbr.rel (%p212) target = $region24
        $region23: #{tpu_custom_call.1} parent=11 // pred_region
          _
        $region24: #{tpu_custom_call.1} parent=11 // pred_fallthru
          _
        // Predicated region
        $region25: #{tpu_custom_call.1} parent=11 // pred_check
          %p215 = pneg %p129
        $region26: #{tpu_custom_call.1} parent=11 // pred_check_branch
          %217 = sbr.rel (%p215) target = $region28
        $region27: #{tpu_custom_call.1} parent=11 // pred_region
          _
        $region28: #{tpu_custom_call.1} parent=11 // pred_fallthru
          _
      $region12: #{tpu_custom_call.1} parent=5 // pred_fallthru
        _
      %p218 = scmp.lt.s32.totalorder %s19, 2
      // Predicated region
      $region29: #{tpu_custom_call.1} parent=5 // pred_check
        %p219 = pneg %p218
      $region30: #{tpu_custom_call.1} parent=5 // pred_check_branch
        %221 = sbr.rel (%p219) target = $region32
      $region31: #{tpu_custom_call.1} parent=5 // pred_region
        // Predicated region
        $region33: #{tpu_custom_call.1} parent=31 // pred_check
          %p222 = pneg %p39
        $region34: #{tpu_custom_call.1} parent=31 // pred_check_branch
          %224 = sbr.rel (%p222) target = $region36
        $region35: #{tpu_custom_call.1} parent=31 // pred_region
          %p225 = scmp.lt.s32.totalorder %s19, 1
          %s226 = scalar_select %p225, %s19, 1
          %s227 = smul.addr %s226, 8
          %s228 = scalar_lea.vmem %s0, %s227
        $region36: #{tpu_custom_call.1} parent=31 // pred_fallthru
          _
      $region32: #{tpu_custom_call.1} parent=5 // pred_fallthru
        _
      %p229 = scmp.le.s32.totalorder 1, %s19
      %p230 = scmp.lt.s32.totalorder %s19, 3
      %p231 = pnand %p229, %p230
      %p232 = pneg %p231
      // Predicated region
      $region37: #{tpu_custom_call.1} parent=5 // pred_check
        _
      $region38: #{tpu_custom_call.1} parent=5 // pred_check_branch
        %234 = sbr.rel (%p231) target = $region40
      $region39: #{tpu_custom_call.1} parent=5 // pred_region
        %s235 = ssub.s32 %s19, 1
        // Predicated region
        $region41: #{tpu_custom_call.1} parent=39 // pred_check
          %p236 = pneg %p66
        $region42: #{tpu_custom_call.1} parent=39 // pred_check_branch
          %238 = sbr.rel (%p236) target = $region44
        $region43: #{tpu_custom_call.1} parent=39 // pred_region
          %239 = dma.done [#allocation4], 256
        $region44: #{tpu_custom_call.1} parent=39 // pred_fallthru
          _
        %p240 = scmp.lt.s32.totalorder %s24, 1
        %s241 = scalar_select %p240, %s24, 1
        %s242 = smul.addr %s241, 8
        %s243 = scalar_lea.vmem %s0, %s242
        %p244 = pneg %p45
        %p245 = pneg %p42
        %p246 = pneg %p66
        %p247 = pneg %p63
        %p248 = pneg %p87
        %p249 = pneg %p84
        %p250 = pneg %p108
        %p251 = pneg %p105
        %p252 = pneg %p129
        %p253 = pneg %p126
        %p254 = pneg %p155
        %p255 = pneg %p152
        %s256 = sand.u32 %s142, 1
        %s257 = scalar_lea.sflag [#allocation5], %s256
        %s258 = sand.u32 %s142, 1
        %s259 = smul.addr %s258, 8
        %s260 = scalar_lea.vmem [#allocation6], %s259
        %p261 = pneg %p181
        %p262 = pneg %p178
        %p263 = scmp.lt.s32.totalorder %s24, 1
        %s264 = scalar_select %p263, %s24, 1
        %s265 = smul.addr %s264, 8
        %s266 = scalar_lea.vmem %s6, %s265
        %p267 = scmp.lt.s32.totalorder %s24, 1
        %s268 = scalar_select %p267, %s24, 1
        %s269 = smul.addr %s268, 8
        %s270 = scalar_lea.vmem %s0, %s269
        %p271 = scmp.lt.s32.totalorder %s24, 1
        %s272 = scalar_select %p271, %s24, 1
        %s273 = smul.addr %s272, 8
        %s274 = scalar_lea.vmem %s6, %s273
        %v275 = vld [vmem:[%s270] sm:$0xff]
        %v276 = vld [vmem:[#allocation3] sm:$0xff]
        %v277 = vld [vmem:[#allocation3 + $0x8] sm:$0xff]
        %v278 = vld [vmem:[%s2] sm:$0x1]
        %v280 = vlaneseq
        %v281 = vshrl.u32 %v280, 7
        %v282 = vsub.s32 0, %v281
        %v283 = vrot.slane %v278, %v282
        %vm285 = vcmask 130048
        %v287 = vsel %vm285, %v275, 0
        %289 = vmatprep.subr.mxu0 0.0
        %290 = vmatpush1.msra.mxu0 %v276
        %291 = vmatprep.subr.mxu0 0.0
        %292 = vmatpush1.msra.mxu0 %v277
        %293 = vmatprep.subr.mxu0 0.0
        %294 = vmatpush1.msra.mxu0 0.0
        %295 = vmatprep.subr.mxu0 0.0
        %296 = vmatpush1.msra.mxu0 0.0
        %297 = vmatprep.subr.mxu0 0.0
        %298 = vmatpush1.msra.mxu0 0.0
        %299 = vmatprep.subr.mxu0 0.0
        %300 = vmatpush1.msra.mxu0 0.0
        %301 = vmatprep.subr.mxu0 0.0
        %302 = vmatpush1.msra.mxu0 0.0
        %303 = vmatprep.subr.mxu0 0.0
        %304 = vmatpush1.msra.mxu0 0.0
        %305 = vmatprep.subr.mxu0 0.0
        %306 = vmatpush1.msra.mxu0 0.0
        %307 = vmatprep.subr.mxu0 0.0
        %308 = vmatpush1.msra.mxu0 0.0
        %309 = vmatprep.subr.mxu0 0.0
        %310 = vmatpush1.msra.mxu0 0.0
        %311 = vmatprep.subr.mxu0 0.0
        %312 = vmatpush1.msra.mxu0 0.0
        %313 = vmatprep.subr.mxu0 0.0
        %314 = vmatpush1.msra.mxu0 0.0
        %315 = vmatprep.subr.mxu0 0.0
        %316 = vmatpush1.msra.mxu0 0.0
        %317 = vmatprep.subr.mxu0 0.0
        %318 = vmatpush1.msra.mxu0 0.0
        %319 = vmatprep.subr.mxu0 0.0
        %320 = vmatpush1.msra.mxu0 0.0
        %321 = vmatprep.subr.mxu0 0.0
        %322 = vmatpush1.msra.mxu0 0.0
        %323 = vmatprep.subr.mxu0 0.0
        %324 = vmatpush1.msra.mxu0 0.0
        %325 = vmatprep.subr.mxu0 0.0
        %326 = vmatpush1.msra.mxu0 0.0
        %327 = vmatprep.subr.mxu0 0.0
        %328 = vmatpush1.msra.mxu0 0.0
        %329 = vmatprep.subr.mxu0 0.0
        %330 = vmatpush1.msra.mxu0 0.0
        %331 = vmatprep.subr.mxu0 0.0
        %332 = vmatpush1.msra.mxu0 0.0
        %333 = vmatprep.subr.mxu0 0.0
        %334 = vmatpush1.msra.mxu0 0.0
        %335 = vmatprep.subr.mxu0 0.0
        %336 = vmatpush1.msra.mxu0 0.0
        %337 = vmatprep.subr.mxu0 0.0
        %338 = vmatpush1.msra.mxu0 0.0
        %339 = vmatprep.subr.mxu0 0.0
        %340 = vmatpush1.msra.mxu0 0.0
        %341 = vmatprep.subr.mxu0 0.0
        %342 = vmatpush1.msra.mxu0 0.0
        %343 = vmatprep.subr.mxu0 0.0
        %344 = vmatpush1.msra.mxu0 0.0
        %345 = vmatprep.subr.mxu0 0.0
        %346 = vmatpush1.msra.mxu0 0.0
        %347 = vmatprep.subr.mxu0 0.0
        %348 = vmatpush1.msra.mxu0 0.0
        %349 = vmatprep.subr.mxu0 0.0
        %350 = vmatpush1.msra.mxu0 0.0
        %351 = vmatprep.subr.mxu0 0.0
        %352 = vmatpush1.msra.mxu0 0.0
        %353 = vmatprep.mubr.f32.mxu0 0.0
        %354 = vmatmul.mubr.f32.gmra.mrb[0].mxu0 %v287
        %v355 = vpop.f32.mrb[0].mxu0
        %v356 = vadd.f32 %v283, %v355
        %v357 = vpop.f32.mrb[0].mxu0
        %358 = vdwg.mxu0
        %vm359 = vcmask 261120
        %360 = vst.msk [vmem:[%s260] sm:$0xff] %vm359, %v356
        %v361 = vld [vmem:[%s3] sm:$0xff]
        %v362 = vld [vmem:[%s3 + $0x8] sm:$0xff]
        %v363 = vld [vmem:[#allocation2] sm:$0x1]
        %v365 = vlaneseq
        %v366 = vshrl.u32 %v365, 7
        %v367 = vsub.s32 0, %v366
        %v368 = vrot.slane %v363, %v367
        %370 = vmatprep.subr.mxu0 0.0
        %371 = vmatpush1.msra.mxu0 %v361
        %372 = vmatprep.subr.mxu0 0.0
        %373 = vmatpush1.msra.mxu0 %v362
        %374 = vmatprep.subr.mxu0 0.0
        %375 = vmatpush1.msra.mxu0 0.0
        %376 = vmatprep.subr.mxu0 0.0
        %377 = vmatpush1.msra.mxu0 0.0
        %378 = vmatprep.subr.mxu0 0.0
        %379 = vmatpush1.msra.mxu0 0.0
        %380 = vmatprep.subr.mxu0 0.0
        %381 = vmatpush1.msra.mxu0 0.0
        %382 = vmatprep.subr.mxu0 0.0
        %383 = vmatpush1.msra.mxu0 0.0
        %384 = vmatprep.subr.mxu0 0.0
        %385 = vmatpush1.msra.mxu0 0.0
        %386 = vmatprep.subr.mxu0 0.0
        %387 = vmatpush1.msra.mxu0 0.0
        %388 = vmatprep.subr.mxu0 0.0
        %389 = vmatpush1.msra.mxu0 0.0
        %390 = vmatprep.subr.mxu0 0.0
        %391 = vmatpush1.msra.mxu0 0.0
        %392 = vmatprep.subr.mxu0 0.0
        %393 = vmatpush1.msra.mxu0 0.0
        %394 = vmatprep.subr.mxu0 0.0
        %395 = vmatpush1.msra.mxu0 0.0
        %396 = vmatprep.subr.mxu0 0.0
        %397 = vmatpush1.msra.mxu0 0.0
        %398 = vmatprep.subr.mxu0 0.0
        %399 = vmatpush1.msra.mxu0 0.0
        %400 = vmatprep.subr.mxu0 0.0
        %401 = vmatpush1.msra.mxu0 0.0
        %402 = vmatprep.subr.mxu0 0.0
        %403 = vmatpush1.msra.mxu0 0.0
        %404 = vmatprep.subr.mxu0 0.0
        %405 = vmatpush1.msra.mxu0 0.0
        %406 = vmatprep.subr.mxu0 0.0
        %407 = vmatpush1.msra.mxu0 0.0
        %408 = vmatprep.subr.mxu0 0.0
        %409 = vmatpush1.msra.mxu0 0.0
        %410 = vmatprep.subr.mxu0 0.0
        %411 = vmatpush1.msra.mxu0 0.0
        %412 = vmatprep.subr.mxu0 0.0
        %413 = vmatpush1.msra.mxu0 0.0
        %414 = vmatprep.subr.mxu0 0.0
        %415 = vmatpush1.msra.mxu0 0.0
        %416 = vmatprep.subr.mxu0 0.0
        %417 = vmatpush1.msra.mxu0 0.0
        %418 = vmatprep.subr.mxu0 0.0
        %419 = vmatpush1.msra.mxu0 0.0
        %420 = vmatprep.subr.mxu0 0.0
        %421 = vmatpush1.msra.mxu0 0.0
        %422 = vmatprep.subr.mxu0 0.0
        %423 = vmatpush1.msra.mxu0 0.0
        %424 = vmatprep.subr.mxu0 0.0
        %425 = vmatpush1.msra.mxu0 0.0
        %426 = vmatprep.subr.mxu0 0.0
        %427 = vmatpush1.msra.mxu0 0.0
        %428 = vmatprep.subr.mxu0 0.0
        %429 = vmatpush1.msra.mxu0 0.0
        %430 = vmatprep.subr.mxu0 0.0
        %431 = vmatpush1.msra.mxu0 0.0
        %432 = vmatprep.subr.mxu0 0.0
        %433 = vmatpush1.msra.mxu0 0.0
        %434 = vmatprep.mubr.f32.mxu0 0.0
        %435 = vmatmul.mubr.f32.gmra.mrb[0].mxu0 %v287
        %v436 = vpop.f32.mrb[0].mxu0
        %v437 = vadd.f32 %v368, %v436
        %v438 = vpop.f32.mrb[0].mxu0
        %439 = vdwg.mxu0
        %vm440 = vcmask 7168
        %441 = vst.msk [vmem:[%s274] sm:$0xff] %vm440, %v437
        %s442 = sand.u32 %s142, 1
        %s443 = scalar_lea.sflag [#allocation5], %s442
        %s444 = sand.u32 %s142, 1
        %s445 = smul.addr %s444, 8
        %s446 = scalar_lea.vmem [#allocation6], %s445
        %p447 = scmp.lt.s32.totalorder %s24, 1
        %s448 = scalar_select %p447, %s24, 1
        %s449 = smul.addr %s448, 8
        %s450 = scalar_lea.vmem %s6, %s449
        // Predicated region
        $region45: #{tpu_custom_call.1} parent=39 // pred_check
          %p451 = pneg %p152
        $region46: #{tpu_custom_call.1} parent=39 // pred_check_branch
          %453 = sbr.rel (%p451) target = $region48
        $region47: #{tpu_custom_call.1} parent=39 // pred_region
          %s455 = ssub.s32 128, 128
          %456 = vsyncadd %s443, %s455
          %s457 = smul.addr %s24, 128
          %s458 = scalar_lea.hbm %s5, %s457
          %s460 = sshll.u32 %s446, 4
          %s461 = int_to_ptr.vmem [resolvable:$true] %s460
          %463 = dma.vmem_to_hbm [thread:$0]  %s461, 128, %s458, %s443
        $region48: #{tpu_custom_call.1} parent=39 // pred_fallthru
          _
        // Predicated region
        $region49: #{tpu_custom_call.1} parent=39 // pred_check
          %p464 = pneg %p178
        $region50: #{tpu_custom_call.1} parent=39 // pred_check_branch
          %466 = sbr.rel (%p464) target = $region52
        $region51: #{tpu_custom_call.1} parent=39 // pred_region
          _
        $region52: #{tpu_custom_call.1} parent=39 // pred_fallthru
          _
      $region40: #{tpu_custom_call.1} parent=5 // pred_fallthru
        _
      %p467 = scmp.le.s32.totalorder 2, %s19
      // Predicated region
      $region53: #{tpu_custom_call.1} parent=5 // pred_check
        %p468 = pneg %p467
      $region54: #{tpu_custom_call.1} parent=5 // pred_check_branch
        %470 = sbr.rel (%p468) target = $region56
      $region55: #{tpu_custom_call.1} parent=5 // pred_region
        %s471 = ssub.s32 %s19, 2
        // Predicated region
        $region57: #{tpu_custom_call.1} parent=55 // pred_check
          %p472 = pneg %p158
        $region58: #{tpu_custom_call.1} parent=55 // pred_check_branch
          %474 = sbr.rel (%p472) target = $region60
        $region59: #{tpu_custom_call.1} parent=55 // pred_region
          %s475 = sand.u32 %s143, 1
          %s476 = scalar_lea.sflag [#allocation5], %s475
          %s477 = sand.u32 %s143, 1
          %s478 = smul.addr %s477, 8
          %s479 = scalar_lea.vmem [#allocation6], %s478
          %480 = dma.done %s476, 128
        $region60: #{tpu_custom_call.1} parent=55 // pred_fallthru
          _
        // Predicated region
        $region61: #{tpu_custom_call.1} parent=55 // pred_check
          %p481 = pneg %p184
        $region62: #{tpu_custom_call.1} parent=55 // pred_check_branch
          %483 = sbr.rel (%p481) target = $region64
        $region63: #{tpu_custom_call.1} parent=55 // pred_region
          %p484 = scmp.lt.s32.totalorder %s25, 1
          %s485 = scalar_select %p484, %s25, 1
          %s486 = smul.addr %s485, 8
          %s487 = scalar_lea.vmem %s6, %s486
        $region64: #{tpu_custom_call.1} parent=55 // pred_fallthru
          _
      $region56: #{tpu_custom_call.1} parent=5 // pred_fallthru
        _
    $region6: #{tpu_custom_call.1} parent=1 // loop_footer
      %s23 = sadd.s32 1, %s19
    $region7: #{tpu_custom_call.1} parent=1 // loop_footer_branch
      %18 = sbr.rel target = $region3
    $region8: #{tpu_custom_call.1} parent=1 // loop_exit
      _
    %488 = vsyncpa [#allocation4], 1
    %s489 = scalar_lea.sflag [#allocation4], 1
    %490 = vsyncpa %s489, 1
    %491 = vsyncpa [#allocation5], 1
    %s492 = scalar_lea.sflag [#allocation5], 1
    %493 = vsyncpa %s492, 1

// kernel: tpu_custom_call.1
$region0: #{tpu_custom_call.1}
  #allocation0 [shape = 'u32[]', space=smem, size = 0x4, offset = 0x4, fixed_abs, tag = 'smem constant byte address 0x4 - core index']
  #allocation1 [shape = 'u32[144,128]{1,0:T(1,128)}', space=vmem, size = 0x12000, scoped, tag = 'internal scratch']
  #allocation2 [shape = 'f32[1,1]{1,0:T(1,128)S(1)}', space=vmem, size = 0x200, scoped, tag = 'scoped memory for tpu_custom_call.1']
  %s0 = inlined_call_operand.vmem [shape: f32[16,16], index: 0, kind: input, shape index: {}]
  %s1 = inlined_call_operand.hbm [shape: f32[16,32], index: 1, kind: input, shape index: {}]
  %s2 = inlined_call_operand.vmem [shape: f32[1,32], index: 2, kind: input, shape index: {}]
  %s3 = inlined_call_operand.vmem [shape: f32[16,1], index: 3, kind: input, shape index: {}]
  %s4 = inlined_call_operand.<no memory space> [shape: f32[1,1], index: 4, kind: input, shape index: {}]
  %s5 = inlined_call_operand.hbm [shape: f32[16,32], index: 5, kind: output, shape index: {0}]
  %s6 = inlined_call_operand.vmem [shape: f32[16,1], index: 6, kind: output, shape index: {1}]
  %7 = xla_tuple %s5, %s6
  %s8 = sld [smem:[#allocation0]]
  $region65: #{tpu_custom_call.1} parent=0
    _
  %s10 = ssub.s32 1, %s8
  %s11 = scalar_select 0, %s10, %s8
  %v12 = vstv %s4
  %13 = vst [vmem:[#allocation2] sm:$0x1] %v12
  $region1: #{tpu_custom_call.1} parent=0
    #allocation3 [shape = 'u8[8192]{0}', space=vmem, size = 0x2000, scoped, tag = 'input window, operand 1, single buffered']
    #allocation4 [shape = 's32[2]{0}', space=sflag, size = 0x8, scoped, tag = 'scoped memory for tpu_custom_call.1']
    #allocation5 [shape = 's32[2]{0}', space=sflag, size = 0x8, scoped, tag = 'scoped memory for tpu_custom_call.1']
    #allocation6 [shape = 'u8[8192]{0}', space=vmem, size = 0x2000, scoped, tag = 'output window, operand 0']
    %14 = vsyncpa [#allocation4], 0
    %15 = vsyncpa [#allocation5], 0
    %s16 = scalar_lea.sflag [#allocation5], 1
    %17 = vsyncpa %s16, 0
    loop: start=0, step=1, limit=4
    $region2: #{tpu_custom_call.1} parent=1 // loop_pre_header
      _
    $region3: #{tpu_custom_call.1} parent=1 // loop_header
      %s19 = sphi 0, %s23
      %p20 = scmp.ge.s32.totalorder %s19, 4
      %s29 = sphi 0, %s31
      %s32 = sphi 0, %s29
      %s33 = sphi 0, %s32
      %s49 = sphi 0, %s33
      %s53 = sphi 0, %s53
      %s55 = sphi 0, %s53
      %s56 = sphi 0, %s55
      %s70 = sphi 0, %s56
      %s74 = sphi 0, %s74
      %s76 = sphi 0, %s74
      %s77 = sphi 0, %s76
      %s91 = sphi 0, %s77
      %s95 = sphi 0, %s95
      %s97 = sphi 0, %s95
      %s98 = sphi 0, %s97
      %s112 = sphi 0, %s98
      %s116 = sphi 0, %s116
      %s118 = sphi 0, %s116
      %s119 = sphi 0, %s118
      %s133 = sphi 0, %s119
      %s139 = sphi 0, %s141
      %s142 = sphi 0, %s139
      %s143 = sphi 0, %s142
      %s159 = sphi 0, %s143
      %s165 = sphi 0, %s167
      %s168 = sphi 0, %s165
      %s169 = sphi 0, %s168
      %s185 = sphi 0, %s169
    $region4: #{tpu_custom_call.1} parent=1 // loop_header_branch
      %22 = sbr.rel (%p20) target = $region8
    $region5: #{tpu_custom_call.1} parent=1 // loop_body
      %s24 = ssub.s32 %s19, 1
      %s25 = ssub.s32 %s19, 2
      %s26 = sadd.s32 %s19, 1
      %s27 = ssub.s32 %s19, %s26
      %p28 = scmp.eq.s32.totalorder %s27, 0
      %s30 = sadd.s32 %s29, 1
      %s31 = scalar_select %p28, %s29, %s30
      %p34 = pneg %p28
      %p35 = scmp.eq.s32.totalorder %s19, 1
      %p36 = por %p34, %p35
      %p37 = scmp.ne.s32.totalorder %s29, %s32
      %p38 = scmp.eq.s32.totalorder %s19, 0
      %p39 = por %p37, %p38
      %p40 = scmp.ne.s32.totalorder %s29, %s32
      %p41 = scmp.eq.s32.totalorder %s24, 1
      %p42 = por %p40, %p41
      %p43 = scmp.ne.s32.totalorder %s32, %s33
      %p44 = scmp.eq.s32.totalorder %s24, 0
      %p45 = por %p43, %p44
      %p46 = scmp.ne.s32.totalorder %s32, %s33
      %p47 = scmp.eq.s32.totalorder %s25, 1
      %p48 = por %p46, %p47
      %p50 = scmp.ne.s32.totalorder %s33, %s49
      %p51 = scmp.eq.s32.totalorder %s25, 0
      %p52 = por %p50, %p51
      %s54 = sadd.s32 %s53, 1
      %p57 = scmp.eq.s32.totalorder %s19, 1
      %p58 = scmp.ne.s32.totalorder %s53, %s55
      %p59 = scmp.eq.s32.totalorder %s19, 0
      %p60 = por %p58, %p59
      %p61 = scmp.ne.s32.totalorder %s53, %s55
      %p62 = scmp.eq.s32.totalorder %s24, 1
      %p63 = por %p61, %p62
      %p64 = scmp.ne.s32.totalorder %s55, %s56
      %p65 = scmp.eq.s32.totalorder %s24, 0
      %p66 = por %p64, %p65
      %p67 = scmp.ne.s32.totalorder %s55, %s56
      %p68 = scmp.eq.s32.totalorder %s25, 1
      %p69 = por %p67, %p68
      %p71 = scmp.ne.s32.totalorder %s56, %s70
      %p72 = scmp.eq.s32.totalorder %s25, 0
      %p73 = por %p71, %p72
      %s75 = sadd.s32 %s74, 1
      %p78 = scmp.eq.s32.totalorder %s19, 1
      %p79 = scmp.ne.s32.totalorder %s74, %s76
      %p80 = scmp.eq.s32.totalorder %s19, 0
      %p81 = por %p79, %p80
      %p82 = scmp.ne.s32.totalorder %s74, %s76
      %p83 = scmp.eq.s32.totalorder %s24, 1
      %p84 = por %p82, %p83
      %p85 = scmp.ne.s32.totalorder %s76, %s77
      %p86 = scmp.eq.s32.totalorder %s24, 0
      %p87 = por %p85, %p86
      %p88 = scmp.ne.s32.totalorder %s76, %s77
      %p89 = scmp.eq.s32.totalorder %s25, 1
      %p90 = por %p88, %p89
      %p92 = scmp.ne.s32.totalorder %s77, %s91
      %p93 = scmp.eq.s32.totalorder %s25, 0
      %p94 = por %p92, %p93
      %s96 = sadd.s32 %s95, 1
      %p99 = scmp.eq.s32.totalorder %s19, 1
      %p100 = scmp.ne.s32.totalorder %s95, %s97
      %p101 = scmp.eq.s32.totalorder %s19, 0
      %p102 = por %p100, %p101
      %p103 = scmp.ne.s32.totalorder %s95, %s97
      %p104 = scmp.eq.s32.totalorder %s24, 1
      %p105 = por %p103, %p104
      %p106 = scmp.ne.s32.totalorder %s97, %s98
      %p107 = scmp.eq.s32.totalorder %s24, 0
      %p108 = por %p106, %p107
      %p109 = scmp.ne.s32.totalorder %s97, %s98
      %p110 = scmp.eq.s32.totalorder %s25, 1
      %p111 = por %p109, %p110
      %p113 = scmp.ne.s32.totalorder %s98, %s112
      %p114 = scmp.eq.s32.totalorder %s25, 0
      %p115 = por %p113, %p114
      %s117 = sadd.s32 %s116, 1
      %p120 = scmp.eq.s32.totalorder %s19, 1
      %p121 = scmp.ne.s32.totalorder %s116, %s118
      %p122 = scmp.eq.s32.totalorder %s19, 0
      %p123 = por %p121, %p122
      %p124 = scmp.ne.s32.totalorder %s116, %s118
      %p125 = scmp.eq.s32.totalorder %s24, 1
      %p126 = por %p124, %p125
      %p127 = scmp.ne.s32.totalorder %s118, %s119
      %p128 = scmp.eq.s32.totalorder %s24, 0
      %p129 = por %p127, %p128
      %p130 = scmp.ne.s32.totalorder %s118, %s119
      %p131 = scmp.eq.s32.totalorder %s25, 1
      %p132 = por %p130, %p131
      %p134 = scmp.ne.s32.totalorder %s119, %s133
      %p135 = scmp.eq.s32.totalorder %s25, 0
      %p136 = por %p134, %p135
      %s137 = ssub.s32 %s19, %s26
      %p138 = scmp.eq.s32.totalorder %s137, 0
      %s140 = sadd.s32 %s139, 1
      %s141 = scalar_select %p138, %s139, %s140
      %p144 = pneg %p138
      %p145 = scmp.eq.s32.totalorder %s19, 1
      %p146 = por %p144, %p145
      %p147 = scmp.ne.s32.totalorder %s139, %s142
      %p148 = scmp.eq.s32.totalorder %s19, 0
      %p149 = por %p147, %p148
      %p150 = scmp.ne.s32.totalorder %s139, %s142
      %p151 = scmp.eq.s32.totalorder %s24, 1
      %p152 = por %p150, %p151
      %p153 = scmp.ne.s32.totalorder %s142, %s143
      %p154 = scmp.eq.s32.totalorder %s24, 0
      %p155 = por %p153, %p154
      %p156 = scmp.ne.s32.totalorder %s142, %s143
      %p157 = scmp.eq.s32.totalorder %s25, 1
      %p158 = por %p156, %p157
      %p160 = scmp.ne.s32.totalorder %s143, %s159
      %p161 = scmp.eq.s32.totalorder %s25, 0
      %p162 = por %p160, %p161
      %s163 = ssub.s32 %s19, %s26
      %p164 = scmp.eq.s32.totalorder %s163, 0
      %s166 = sadd.s32 %s165, 1
      %s167 = scalar_select %p164, %s165, %s166
      %p170 = pneg %p164
      %p171 = scmp.eq.s32.totalorder %s19, 1
      %p172 = por %p170, %p171
      %p173 = scmp.ne.s32.totalorder %s165, %s168
      %p174 = scmp.eq.s32.totalorder %s19, 0
      %p175 = por %p173, %p174
      %p176 = scmp.ne.s32.totalorder %s165, %s168
      %p177 = scmp.eq.s32.totalorder %s24, 1
      %p178 = por %p176, %p177
      %p179 = scmp.ne.s32.totalorder %s168, %s169
      %p180 = scmp.eq.s32.totalorder %s24, 0
      %p181 = por %p179, %p180
      %p182 = scmp.ne.s32.totalorder %s168, %s169
      %p183 = scmp.eq.s32.totalorder %s25, 1
      %p184 = por %p182, %p183
      %p186 = scmp.ne.s32.totalorder %s169, %s185
      %p187 = scmp.eq.s32.totalorder %s25, 0
      %p188 = por %p186, %p187
      %p189 = scmp.le.s32.totalorder 1, %s19
      %p190 = scmp.lt.s32.totalorder %s19, 3
      %p191 = pnand %p189, %p190
      %p192 = pneg %p191
      // Predicated region
      $region9: #{tpu_custom_call.1} parent=5 // pred_check
        _
      $region10: #{tpu_custom_call.1} parent=5 // pred_check_branch
        %194 = sbr.rel (%p191) target = $region12
      $region11: #{tpu_custom_call.1} parent=5 // pred_region
        %s195 = ssub.s32 %s19, 1
        // Predicated region
        $region13: #{tpu_custom_call.1} parent=11 // pred_check
          %p196 = pneg %p66
        $region14: #{tpu_custom_call.1} parent=11 // pred_check_branch
          %198 = sbr.rel (%p196) target = $region16
        $region15: #{tpu_custom_call.1} parent=11 // pred_region
          %s200 = ssub.s32 256, 256
          %201 = vsyncadd [#allocation4], %s200
          %s202 = sshll.u32 [#allocation3], 4
          %s203 = int_to_ptr.vmem [resolvable:$true] %s202
          %208 = dma.hbm_to_vmem [thread:$0]  %s1, 256, %s203, [#allocation4], 128, 128, 8
        $region16: #{tpu_custom_call.1} parent=11 // pred_fallthru
          _
        // Predicated region
        $region17: #{tpu_custom_call.1} parent=11 // pred_check
          %p209 = pneg %p87
        $region18: #{tpu_custom_call.1} parent=11 // pred_check_branch
          %211 = sbr.rel (%p209) target = $region20
        $region19: #{tpu_custom_call.1} parent=11 // pred_region
          _
        $region20: #{tpu_custom_call.1} parent=11 // pred_fallthru
          _
        // Predicated region
        $region21: #{tpu_custom_call.1} parent=11 // pred_check
          %p212 = pneg %p108
        $region22: #{tpu_custom_call.1} parent=11 // pred_check_branch
          %214 = sbr.rel (%p212) target = $region24
        $region23: #{tpu_custom_call.1} parent=11 // pred_region
          _
        $region24: #{tpu_custom_call.1} parent=11 // pred_fallthru
          _
        // Predicated region
        $region25: #{tpu_custom_call.1} parent=11 // pred_check
          %p215 = pneg %p129
        $region26: #{tpu_custom_call.1} parent=11 // pred_check_branch
          %217 = sbr.rel (%p215) target = $region28
        $region27: #{tpu_custom_call.1} parent=11 // pred_region
          _
        $region28: #{tpu_custom_call.1} parent=11 // pred_fallthru
          _
      $region12: #{tpu_custom_call.1} parent=5 // pred_fallthru
        _
      %p218 = scmp.lt.s32.totalorder %s19, 2
      // Predicated region
      $region29: #{tpu_custom_call.1} parent=5 // pred_check
        %p219 = pneg %p218
      $region30: #{tpu_custom_call.1} parent=5 // pred_check_branch
        %221 = sbr.rel (%p219) target = $region32
      $region31: #{tpu_custom_call.1} parent=5 // pred_region
        // Predicated region
        $region33: #{tpu_custom_call.1} parent=31 // pred_check
          %p222 = pneg %p39
        $region34: #{tpu_custom_call.1} parent=31 // pred_check_branch
          %224 = sbr.rel (%p222) target = $region36
        $region35: #{tpu_custom_call.1} parent=31 // pred_region
          %p225 = scmp.lt.s32.totalorder %s19, 1
          %s226 = scalar_select %p225, %s19, 1
          %s227 = smul.addr %s226, 8
          %s228 = scalar_lea.vmem %s0, %s227
        $region36: #{tpu_custom_call.1} parent=31 // pred_fallthru
          _
      $region32: #{tpu_custom_call.1} parent=5 // pred_fallthru
        _
      %p229 = scmp.le.s32.totalorder 1, %s19
      %p230 = scmp.lt.s32.totalorder %s19, 3
      %p231 = pnand %p229, %p230
      %p232 = pneg %p231
      // Predicated region
      $region37: #{tpu_custom_call.1} parent=5 // pred_check
        _
      $region38: #{tpu_custom_call.1} parent=5 // pred_check_branch
        %234 = sbr.rel (%p231) target = $region40
      $region39: #{tpu_custom_call.1} parent=5 // pred_region
        %s235 = ssub.s32 %s19, 1
        // Predicated region
        $region41: #{tpu_custom_call.1} parent=39 // pred_check
          %p236 = pneg %p66
        $region42: #{tpu_custom_call.1} parent=39 // pred_check_branch
          %238 = sbr.rel (%p236) target = $region44
        $region43: #{tpu_custom_call.1} parent=39 // pred_region
          %239 = dma.done [#allocation4], 256
        $region44: #{tpu_custom_call.1} parent=39 // pred_fallthru
          _
        %p240 = scmp.lt.s32.totalorder %s24, 1
        %s241 = scalar_select %p240, %s24, 1
        %s242 = smul.addr %s241, 8
        %s243 = scalar_lea.vmem %s0, %s242
        %p244 = pneg %p45
        %p245 = pneg %p42
        %p246 = pneg %p66
        %p247 = pneg %p63
        %p248 = pneg %p87
        %p249 = pneg %p84
        %p250 = pneg %p108
        %p251 = pneg %p105
        %p252 = pneg %p129
        %p253 = pneg %p126
        %p254 = pneg %p155
        %p255 = pneg %p152
        %s256 = sand.u32 %s142, 1
        %s257 = scalar_lea.sflag [#allocation5], %s256
        %s258 = sand.u32 %s142, 1
        %s259 = smul.addr %s258, 8
        %s260 = scalar_lea.vmem [#allocation6], %s259
        %p261 = pneg %p181
        %p262 = pneg %p178
        %p263 = scmp.lt.s32.totalorder %s24, 1
        %s264 = scalar_select %p263, %s24, 1
        %s265 = smul.addr %s264, 8
        %s266 = scalar_lea.vmem %s6, %s265
        %p267 = scmp.lt.s32.totalorder %s24, 1
        %s268 = scalar_select %p267, %s24, 1
        %s269 = smul.addr %s268, 8
        %s270 = scalar_lea.vmem %s0, %s269
        %p271 = scmp.lt.s32.totalorder %s24, 1
        %s272 = scalar_select %p271, %s24, 1
        %s273 = smul.addr %s272, 8
        %s274 = scalar_lea.vmem %s6, %s273
        %v275 = vld [vmem:[%s270] sm:$0xff]
        %v276 = vld [vmem:[#allocation3] sm:$0xff]
        %v277 = vld [vmem:[#allocation3 + $0x8] sm:$0xff]
        %v278 = vld [vmem:[%s2] sm:$0x1]
        %v280 = vlaneseq
        %v281 = vshrl.u32 %v280, 7
        %v282 = vsub.s32 0, %v281
        %v283 = vrot.slane %v278, %v282
        %vm285 = vcmask 130048
        %v287 = vsel %vm285, %v275, 0
        %289 = vmatprep.subr.mxu0 0.0
        %290 = vmatpush1.msra.mxu0 %v276
        %291 = vmatprep.subr.mxu0 0.0
        %292 = vmatpush1.msra.mxu0 %v277
        %293 = vmatprep.subr.mxu0 0.0
        %294 = vmatpush1.msra.mxu0 0.0
        %295 = vmatprep.subr.mxu0 0.0
        %296 = vmatpush1.msra.mxu0 0.0
        %297 = vmatprep.subr.mxu0 0.0
        %298 = vmatpush1.msra.mxu0 0.0
        %299 = vmatprep.subr.mxu0 0.0
        %300 = vmatpush1.msra.mxu0 0.0
        %301 = vmatprep.subr.mxu0 0.0
        %302 = vmatpush1.msra.mxu0 0.0
        %303 = vmatprep.subr.mxu0 0.0
        %304 = vmatpush1.msra.mxu0 0.0
        %305 = vmatprep.subr.mxu0 0.0
        %306 = vmatpush1.msra.mxu0 0.0
        %307 = vmatprep.subr.mxu0 0.0
        %308 = vmatpush1.msra.mxu0 0.0
        %309 = vmatprep.subr.mxu0 0.0
        %310 = vmatpush1.msra.mxu0 0.0
        %311 = vmatprep.subr.mxu0 0.0
        %312 = vmatpush1.msra.mxu0 0.0
        %313 = vmatprep.subr.mxu0 0.0
        %314 = vmatpush1.msra.mxu0 0.0
        %315 = vmatprep.subr.mxu0 0.0
        %316 = vmatpush1.msra.mxu0 0.0
        %317 = vmatprep.subr.mxu0 0.0
        %318 = vmatpush1.msra.mxu0 0.0
        %319 = vmatprep.subr.mxu0 0.0
        %320 = vmatpush1.msra.mxu0 0.0
        %321 = vmatprep.subr.mxu0 0.0
        %322 = vmatpush1.msra.mxu0 0.0
        %323 = vmatprep.subr.mxu0 0.0
        %324 = vmatpush1.msra.mxu0 0.0
        %325 = vmatprep.subr.mxu0 0.0
        %326 = vmatpush1.msra.mxu0 0.0
        %327 = vmatprep.subr.mxu0 0.0
        %328 = vmatpush1.msra.mxu0 0.0
        %329 = vmatprep.subr.mxu0 0.0
        %330 = vmatpush1.msra.mxu0 0.0
        %331 = vmatprep.subr.mxu0 0.0
        %332 = vmatpush1.msra.mxu0 0.0
        %333 = vmatprep.subr.mxu0 0.0
        %334 = vmatpush1.msra.mxu0 0.0
        %335 = vmatprep.subr.mxu0 0.0
        %336 = vmatpush1.msra.mxu0 0.0
        %337 = vmatprep.subr.mxu0 0.0
        %338 = vmatpush1.msra.mxu0 0.0
        %339 = vmatprep.subr.mxu0 0.0
        %340 = vmatpush1.msra.mxu0 0.0
        %341 = vmatprep.subr.mxu0 0.0
        %342 = vmatpush1.msra.mxu0 0.0
        %343 = vmatprep.subr.mxu0 0.0
        %344 = vmatpush1.msra.mxu0 0.0
        %345 = vmatprep.subr.mxu0 0.0
        %346 = vmatpush1.msra.mxu0 0.0
        %347 = vmatprep.subr.mxu0 0.0
        %348 = vmatpush1.msra.mxu0 0.0
        %349 = vmatprep.subr.mxu0 0.0
        %350 = vmatpush1.msra.mxu0 0.0
        %351 = vmatprep.subr.mxu0 0.0
        %352 = vmatpush1.msra.mxu0 0.0
        %353 = vmatprep.mubr.f32.mxu0 0.0
        %354 = vmatmul.mubr.f32.gmra.mrb[0].mxu0 %v287
        %v355 = vpop.f32.mrb[0].mxu0
        %v356 = vadd.f32 %v283, %v355
        %v357 = vpop.f32.mrb[0].mxu0
        %358 = vdwg.mxu0
        %vm359 = vcmask 261120
        %360 = vst.msk [vmem:[%s260] sm:$0xff] %vm359, %v356
        %v361 = vld [vmem:[%s3] sm:$0xff]
        %v362 = vld [vmem:[%s3 + $0x8] sm:$0xff]
        %v363 = vld [vmem:[#allocation2] sm:$0x1]
        %v365 = vlaneseq
        %v366 = vshrl.u32 %v365, 7
        %v367 = vsub.s32 0, %v366
        %v368 = vrot.slane %v363, %v367
        %370 = vmatprep.subr.mxu0 0.0
        %371 = vmatpush1.msra.mxu0 %v361
        %372 = vmatprep.subr.mxu0 0.0
        %373 = vmatpush1.msra.mxu0 %v362
        %374 = vmatprep.subr.mxu0 0.0
        %375 = vmatpush1.msra.mxu0 0.0
        %376 = vmatprep.subr.mxu0 0.0
        %377 = vmatpush1.msra.mxu0 0.0
        %378 = vmatprep.subr.mxu0 0.0
        %379 = vmatpush1.msra.mxu0 0.0
        %380 = vmatprep.subr.mxu0 0.0
        %381 = vmatpush1.msra.mxu0 0.0
        %382 = vmatprep.subr.mxu0 0.0
        %383 = vmatpush1.msra.mxu0 0.0
        %384 = vmatprep.subr.mxu0 0.0
        %385 = vmatpush1.msra.mxu0 0.0
        %386 = vmatprep.subr.mxu0 0.0
        %387 = vmatpush1.msra.mxu0 0.0
        %388 = vmatprep.subr.mxu0 0.0
        %389 = vmatpush1.msra.mxu0 0.0
        %390 = vmatprep.subr.mxu0 0.0
        %391 = vmatpush1.msra.mxu0 0.0
        %392 = vmatprep.subr.mxu0 0.0
        %393 = vmatpush1.msra.mxu0 0.0
        %394 = vmatprep.subr.mxu0 0.0
        %395 = vmatpush1.msra.mxu0 0.0
        %396 = vmatprep.subr.mxu0 0.0
        %397 = vmatpush1.msra.mxu0 0.0
        %398 = vmatprep.subr.mxu0 0.0
        %399 = vmatpush1.msra.mxu0 0.0
        %400 = vmatprep.subr.mxu0 0.0
        %401 = vmatpush1.msra.mxu0 0.0
        %402 = vmatprep.subr.mxu0 0.0
        %403 = vmatpush1.msra.mxu0 0.0
        %404 = vmatprep.subr.mxu0 0.0
        %405 = vmatpush1.msra.mxu0 0.0
        %406 = vmatprep.subr.mxu0 0.0
        %407 = vmatpush1.msra.mxu0 0.0
        %408 = vmatprep.subr.mxu0 0.0
        %409 = vmatpush1.msra.mxu0 0.0
        %410 = vmatprep.subr.mxu0 0.0
        %411 = vmatpush1.msra.mxu0 0.0
        %412 = vmatprep.subr.mxu0 0.0
        %413 = vmatpush1.msra.mxu0 0.0
        %414 = vmatprep.subr.mxu0 0.0
        %415 = vmatpush1.msra.mxu0 0.0
        %416 = vmatprep.subr.mxu0 0.0
        %417 = vmatpush1.msra.mxu0 0.0
        %418 = vmatprep.subr.mxu0 0.0
        %419 = vmatpush1.msra.mxu0 0.0
        %420 = vmatprep.subr.mxu0 0.0
        %421 = vmatpush1.msra.mxu0 0.0
        %422 = vmatprep.subr.mxu0 0.0
        %423 = vmatpush1.msra.mxu0 0.0
        %424 = vmatprep.subr.mxu0 0.0
        %425 = vmatpush1.msra.mxu0 0.0
        %426 = vmatprep.subr.mxu0 0.0
        %427 = vmatpush1.msra.mxu0 0.0
        %428 = vmatprep.subr.mxu0 0.0
        %429 = vmatpush1.msra.mxu0 0.0
        %430 = vmatprep.subr.mxu0 0.0
        %431 = vmatpush1.msra.mxu0 0.0
        %432 = vmatprep.subr.mxu0 0.0
        %433 = vmatpush1.msra.mxu0 0.0
        %434 = vmatprep.mubr.f32.mxu0 0.0
        %435 = vmatmul.mubr.f32.gmra.mrb[0].mxu0 %v287
        %v436 = vpop.f32.mrb[0].mxu0
        %v437 = vadd.f32 %v368, %v436
        %v438 = vpop.f32.mrb[0].mxu0
        %439 = vdwg.mxu0
        %vm440 = vcmask 7168
        %441 = vst.msk [vmem:[%s274] sm:$0xff] %vm440, %v437
        %s442 = sand.u32 %s142, 1
        %s443 = scalar_lea.sflag [#allocation5], %s442
        %s444 = sand.u32 %s142, 1
        %s445 = smul.addr %s444, 8
        %s446 = scalar_lea.vmem [#allocation6], %s445
        %p447 = scmp.lt.s32.totalorder %s24, 1
        %s448 = scalar_select %p447, %s24, 1
        %s449 = smul.addr %s448, 8
        %s450 = scalar_lea.vmem %s6, %s449
        // Predicated region
        $region45: #{tpu_custom_call.1} parent=39 // pred_check
          %p451 = pneg %p152
        $region46: #{tpu_custom_call.1} parent=39 // pred_check_branch
          %453 = sbr.rel (%p451) target = $region48
        $region47: #{tpu_custom_call.1} parent=39 // pred_region
          %s455 = ssub.s32 128, 128
          %456 = vsyncadd %s443, %s455
          %s457 = smul.addr %s24, 128
          %s458 = scalar_lea.hbm %s5, %s457
          %s460 = sshll.u32 %s446, 4
          %s461 = int_to_ptr.vmem [resolvable:$true] %s460
          %463 = dma.vmem_to_hbm [thread:$0]  %s461, 128, %s458, %s443
        $region48: #{tpu_custom_call.1} parent=39 // pred_fallthru
          _
        // Predicated region
        $region49: #{tpu_custom_call.1} parent=39 // pred_check
          %p464 = pneg %p178
        $region50: #{tpu_custom_call.1} parent=39 // pred_check_branch
          %466 = sbr.rel (%p464) target = $region52
        $region51: #{tpu_custom_call.1} parent=39 // pred_region
          _
        $region52: #{tpu_custom_call.1} parent=39 // pred_fallthru
          _
      $region40: #{tpu_custom_call.1} parent=5 // pred_fallthru
        _
      %p467 = scmp.le.s32.totalorder 2, %s19
      // Predicated region
      $region53: #{tpu_custom_call.1} parent=5 // pred_check
        %p468 = pneg %p467
      $region54: #{tpu_custom_call.1} parent=5 // pred_check_branch
        %470 = sbr.rel (%p468) target = $region56
      $region55: #{tpu_custom_call.1} parent=5 // pred_region
        %s471 = ssub.s32 %s19, 2
        // Predicated region
        $region57: #{tpu_custom_call.1} parent=55 // pred_check
          %p472 = pneg %p158
        $region58: #{tpu_custom_call.1} parent=55 // pred_check_branch
          %474 = sbr.rel (%p472) target = $region60
        $region59: #{tpu_custom_call.1} parent=55 // pred_region
          %s475 = sand.u32 %s143, 1
          %s476 = scalar_lea.sflag [#allocation5], %s475
          %s477 = sand.u32 %s143, 1
          %s478 = smul.addr %s477, 8
          %s479 = scalar_lea.vmem [#allocation6], %s478
          %480 = dma.done %s476, 128
        $region60: #{tpu_custom_call.1} parent=55 // pred_fallthru
          _
        // Predicated region
        $region61: #{tpu_custom_call.1} parent=55 // pred_check
          %p481 = pneg %p184
        $region62: #{tpu_custom_call.1} parent=55 // pred_check_branch
          %483 = sbr.rel (%p481) target = $region64
        $region63: #{tpu_custom_call.1} parent=55 // pred_region
          %p484 = scmp.lt.s32.totalorder %s25, 1
          %s485 = scalar_select %p484, %s25, 1
          %s486 = smul.addr %s485, 8
          %s487 = scalar_lea.vmem %s6, %s486
        $region64: #{tpu_custom_call.1} parent=55 // pred_fallthru
          _
      $region56: #{tpu_custom_call.1} parent=5 // pred_fallthru
        _
    $region6: #{tpu_custom_call.1} parent=1 // loop_footer
      %s23 = sadd.s32 1, %s19
    $region7: #{tpu_custom_call.1} parent=1 // loop_footer_branch
      %18 = sbr.rel target = $region3
    $region8: #{tpu_custom_call.1} parent=1 // loop_exit
      _
    %488 = vsyncpa [#allocation4], 1
    %s489 = scalar_lea.sflag [#allocation4], 1
    %490 = vsyncpa %s489, 1
    %491 = vsyncpa [#allocation5], 1
    %s492 = scalar_lea.sflag [#allocation5], 1
    %493 = vsyncpa %s492, 1

</llo_original>
